<compile_context>
chip_gen: v6e
topology: v6e:2x2x1
jax: 0.10.0
libtpu: 0.0.40
codegen_flags: <defaults>
</compile_context>

<pallas_src>
import jax
import jax.numpy as jnp
from jax import lax
from jax.experimental import pallas as pl
from jax.experimental.pallas import tpu as pltpu


# ---------------------------------------------------------------------------
# Kernel 1: L2-normalize cls_features & prompt_key + similarity matmul (MXU)
# ---------------------------------------------------------------------------
def _sim_kernel(cls_ref, key_ref, sim_ref):
    x = cls_ref[...].astype(jnp.float32)          # (B, C)
    k = key_ref[...].astype(jnp.float32)          # (P, C)
    # F.normalize(p=2, dim=-1, eps=1e-12): x / max(||x||_2, eps)
    # == x * rsqrt(max(||x||^2, eps^2)); rsqrt runs on the EUP slot.
    eps2 = jnp.float32(1e-24)
    xn = x * lax.rsqrt(jnp.maximum(jnp.sum(x * x, axis=-1, keepdims=True), eps2))
    kn = k * lax.rsqrt(jnp.maximum(jnp.sum(k * k, axis=-1, keepdims=True), eps2))
    sim_ref[...] = jnp.dot(xn, kn.T, preferred_element_type=jnp.float32)  # (B, P)


# ---------------------------------------------------------------------------
# Kernel 2: prompt gather as one-hot matmul.
#   onehot:  (K, P)          -- built in the wrapper from major_prompt_id
#   prompt:  (P, Lp*Cd)      -- per-layer slice, lane-dense rows (Lp*Cd = 128)
#   out:     (K, Lp*Cd)      -- single lane-dense store per layer
# ---------------------------------------------------------------------------
def _gather_kernel(onehot_ref, prompt_ref, out_ref):
    out_ref[...] = jnp.dot(onehot_ref[...], prompt_ref[...],
                           preferred_element_type=jnp.float32)


# ---------------------------------------------------------------------------
# L2P module (uniform(0,1) init, as nn.init.uniform_ default)
# ---------------------------------------------------------------------------
class L2P:
    def __init__(self, length, pool_size, top_k, num_layers=1, embed_dim=32, *, key):
        self.length = length
        self.pool_size = pool_size
        self.top_k = top_k
        self.num_layers = num_layers
        self.embed_dim = embed_dim
        k1, k2 = jax.random.split(key)
        self.prompt = jax.random.uniform(
            k1, (num_layers, pool_size, length, embed_dim), dtype=jnp.float32)
        self.prompt_key = jax.random.uniform(
            k2, (pool_size, embed_dim), dtype=jnp.float32)

    def __call__(self, x_embed, cls_features):
        B, N, C = x_embed.shape
        assert C == self.embed_dim
        P, K, L, Lp, Cd = (self.pool_size, self.top_k, self.num_layers,
                           self.length, self.embed_dim)

        # ---- kernel 1: normalize + similarity --------------------------------
        sim = pl.pallas_call(
            _sim_kernel,
            out_shape=jax.ShapeDtypeStruct((B, P), jnp.float32),
            grid=(1,),
            in_specs=[pl.BlockSpec((B, Cd), lambda i: (0, 0)),
                      pl.BlockSpec((P, Cd), lambda i: (0, 0))],
            out_specs=pl.BlockSpec((B, P), lambda i: (0, 0)),
        )(cls_features, self.prompt_key)

        # ---- glue: topk + unique-with-counts + majority selection ------------
        # TODO(synk): torch.unique/pad/topk bookkeeping is scalar, data-dependent
        # control flow, emulated in plain JAX (sorted present-ids + counts).
        # Tie-breaking of equal counts/similarities may differ from torch.topk.
        _, idx = lax.top_k(sim, K)                                   # (B, K)
        counts = jnp.zeros((P,), jnp.int32).at[idx.reshape(-1)].add(1)
        present = counts > 0
        ids = jnp.arange(P, dtype=jnp.int32)
        sorted_ids = jnp.sort(jnp.where(present, ids, P))            # absent -> end
        num_unique = jnp.sum(present.astype(jnp.int32))
        prompt_id = jnp.where(ids < num_unique, sorted_ids, sorted_ids[0])
        id_counts = jnp.where(ids < num_unique,
                              counts[jnp.clip(sorted_ids, 0, P - 1)], 0)
        _, major_idx = lax.top_k(id_counts, K)
        major_prompt_id = prompt_id[major_idx].astype(jnp.int32)     # (K,)

        # reduce_sim is just a column gather of sim (no extra kernel needed):
        # sum_{b,k} x_norm[b] . key_norm[major_id[k]] / B == sum sim[:, major_id] / B
        reduce_sim = jnp.sum(jnp.take(sim, major_prompt_id, axis=1)) / jnp.float32(B)

        # ---- kernel 2: gather prompts (once, then broadcast over batch) -------
        onehot = jax.nn.one_hot(major_prompt_id, P, dtype=jnp.float32)  # (K, P)
        prompt_flat = self.prompt.reshape(L, P, Lp * Cd)                # lane-dense rows
        gathered = pl.pallas_call(
            _gather_kernel,
            out_shape=jax.ShapeDtypeStruct((L, K, Lp * Cd), jnp.float32),
            grid=(L,),
            in_specs=[pl.BlockSpec((K, P), lambda l: (0, 0)),
                      pl.BlockSpec((None, P, Lp * Cd), lambda l: (l, 0, 0))],
            out_specs=pl.BlockSpec((None, K, Lp * Cd), lambda l: (l, 0, 0)),
            compiler_params=pltpu.CompilerParams(
                dimension_semantics=("parallel",)),
        )(onehot, prompt_flat)

        # identical across batch in the reference (idx rows are identical) -> broadcast
        batched_prompt = jnp.broadcast_to(
            gathered.reshape(L, 1, K, Lp, Cd), (L, B, K, Lp, Cd)
        ).reshape(L, B, K * Lp, Cd)

        return batched_prompt, reduce_sim, major_prompt_id


# ---------------------------------------------------------------------------
# Pure-JAX reference (for a lightweight correctness check of the kernels)
# ---------------------------------------------------------------------------
def _reference(prompt, prompt_key, cls_features, major_prompt_id, B, L, K, Lp, Cd):
    def l2n(v):
        return v / jnp.maximum(jnp.linalg.norm(v, axis=-1, keepdims=True), 1e-12)
    key_norm = l2n(prompt_key)
    x_norm = l2n(cls_features)
    idx = jnp.tile(major_prompt_id[None, :], (B, 1))                  # (B, K)
    bp = prompt[:, idx].reshape(L, B, K * Lp, Cd)
    rs = jnp.sum(key_norm[idx] * x_norm[:, None, :]) / B
    return bp, rs


if __name__ == "__main__":
    B, N, C = 2, 8, 32
    pool_size, top_k, length, num_layers = 10, 5, 4, 1

    root = jax.random.PRNGKey(0)
    k_mod, k_x, k_cls = jax.random.split(root, 3)

    model = L2P(length=length, pool_size=pool_size, top_k=top_k,
                num_layers=num_layers, embed_dim=C, key=k_mod)

    x_embed = jax.random.normal(k_x, (B, N, C), dtype=jnp.float32)
    cls_features = jax.random.normal(k_cls, (B, C), dtype=jnp.float32)

    batched_prompt, reduce_sim, major_ids = model(x_embed, cls_features)
    jax.block_until_ready((batched_prompt, reduce_sim))

    bp_ref, rs_ref = _reference(model.prompt, model.prompt_key, cls_features,
                                major_ids, B, num_layers, top_k, length, C)
    assert batched_prompt.shape == (num_layers, B, top_k * length, C)
    assert jnp.allclose(batched_prompt, bp_ref, atol=1e-5)
    assert jnp.allclose(reduce_sim, rs_ref, atol=1e-5)

    print("KERNEL_OK")
</pallas_src>

<mosaic_0001>
module attributes {stable_mosaic.version = 11 : i64} {
  func.func @_sim_kernel(%arg0: i32, %arg1: memref<2x32xf32, #tpu.memory_space<vmem>>, %arg2: memref<10x32xf32, #tpu.memory_space<vmem>>, %arg3: memref<2x10xf32, #tpu.memory_space<vmem>>) attributes {dimension_semantics = [#tpu.dimension_semantics<arbitrary>], iteration_bounds = array<i64: 1>, scalar_prefetch = 0 : i64, scratch_operands = 0 : i64, tpu.core_type = #tpu.core_type<tc>, window_params = [{pipeline_mode = #tpu.pipeline_mode<synchronous>, transform_indices = @transform_0, window_bounds = array<i64: 2, 32>}, {pipeline_mode = #tpu.pipeline_mode<synchronous>, transform_indices = @transform_1, window_bounds = array<i64: 10, 32>}, {pipeline_mode = #tpu.pipeline_mode<synchronous>, transform_indices = @transform_2, window_bounds = array<i64: 2, 10>}]} {
    %c0 = arith.constant 0 : index
    %c0_0 = arith.constant 0 : index
    %0 = vector.load %arg1[%c0, %c0_0] : memref<2x32xf32, #tpu.memory_space<vmem>>, vector<2x32xf32>
    %c0_1 = arith.constant 0 : index
    %c0_2 = arith.constant 0 : index
    %1 = vector.load %arg2[%c0_1, %c0_2] : memref<10x32xf32, #tpu.memory_space<vmem>>, vector<10x32xf32>
    %2 = arith.mulf %0, %0 : vector<2x32xf32>
    %cst = arith.constant dense<0.000000e+00> : vector<2xf32>
    %3 = vector.multi_reduction <add>, %2, %cst [1] : vector<2x32xf32> to vector<2xf32>
    %4 = vector.shape_cast %3 : vector<2xf32> to vector<2x1xf32>
    %cst_3 = arith.constant 1.000000e-24 : f32
    %5 = vector.broadcast %cst_3 : f32 to vector<2x1xf32>
    %6 = arith.maximumf %4, %5 : vector<2x1xf32>
    %7 = math.rsqrt %6 : vector<2x1xf32>
    %8 = vector.broadcast %7 : vector<2x1xf32> to vector<2x32xf32>
    %9 = arith.mulf %0, %8 : vector<2x32xf32>
    %10 = arith.mulf %1, %1 : vector<10x32xf32>
    %cst_4 = arith.constant dense<0.000000e+00> : vector<10xf32>
    %11 = vector.multi_reduction <add>, %10, %cst_4 [1] : vector<10x32xf32> to vector<10xf32>
    %12 = vector.shape_cast %11 : vector<10xf32> to vector<10x1xf32>
    %cst_5 = arith.constant 1.000000e-24 : f32
    %13 = vector.broadcast %cst_5 : f32 to vector<10x1xf32>
    %14 = arith.maximumf %12, %13 : vector<10x1xf32>
    %15 = math.rsqrt %14 : vector<10x1xf32>
    %16 = vector.broadcast %15 : vector<10x1xf32> to vector<10x32xf32>
    %17 = arith.mulf %1, %16 : vector<10x32xf32>
    %18 = tpu.transpose %17, [1, 0] : vector<10x32xf32> -> vector<32x10xf32>
    %cst_6 = arith.constant dense<0.000000e+00> : vector<2x10xf32>
    %19 = tpu.matmul %9, %18, %cst_6 {dimension_numbers = #tpu.dot_dimension_numbers<[1], [0], [0], [1], [0, 0, 1, 1], [], []>} : vector<2x32xf32>, vector<32x10xf32>, vector<2x10xf32> -> vector<2x10xf32>
    %c0_7 = arith.constant 0 : index
    %c0_8 = arith.constant 0 : index
    %20 = vector.load %arg3[%c0_7, %c0_8] : memref<2x10xf32, #tpu.memory_space<vmem>>, vector<2x10xf32>
    tpu.vector_store %arg3[%c0_7, %c0_8], %19 {strides = array<i32>} : memref<2x10xf32, #tpu.memory_space<vmem>>, vector<2x10xf32>,
    return
  }
  func.func @transform_0(%arg0: i32) -> (i32, i32) {
    %c0_i32 = arith.constant 0 : i32
    %c0_i32_0 = arith.constant 0 : i32
    %c0_i32_1 = arith.constant 0 : i32
    return %c0_i32, %c0_i32_0 : i32, i32
  }
  func.func @transform_1(%arg0: i32) -> (i32, i32) {
    %c0_i32 = arith.constant 0 : i32
    %c0_i32_0 = arith.constant 0 : i32
    %c0_i32_1 = arith.constant 0 : i32
    return %c0_i32, %c0_i32_0 : i32, i32
  }
  func.func @transform_2(%arg0: i32) -> (i32, i32) {
    %c0_i32 = arith.constant 0 : i32
    %c0_i32_0 = arith.constant 0 : i32
    %c0_i32_1 = arith.constant 0 : i32
    return %c0_i32, %c0_i32_0 : i32, i32
  }
}

</mosaic_0001>

<llo_original>
// kernel: tpu_custom_call.1
$region0: #{tpu_custom_call.1}
  #allocation0 [shape = 'u32[]', space=smem, size = 0x4, offset = 0x4, fixed_abs, tag = 'smem constant byte address 0x4 - core index']
  #allocation1 [shape = 'u32[144,128]{1,0:T(1,128)}', space=vmem, size = 0x12000, scoped, tag = 'internal scratch']
  %s0 = inlined_call_operand.hbm [shape: f32[2,32], index: 0, kind: input, shape index: {}]
  %s1 = inlined_call_operand.hbm [shape: f32[10,32], index: 1, kind: input, shape index: {}]
  %s2 = inlined_call_operand.hbm [shape: f32[2,10], index: 2, kind: output, shape index: {}]
  %s3 = sld [smem:[#allocation0]]
  $region26: #{tpu_custom_call.1} parent=0
    _
  %s5 = ssub.s32 1, %s3
  %s6 = scalar_select 0, %s5, %s3
  $region1: #{tpu_custom_call.1} parent=0
    #allocation2 [shape = 'u8[1024]{0}', space=vmem, size = 0x400, scoped, tag = 'input window, operand 0, single buffered']
    #allocation3 [shape = 's32[1]{0}', space=sflag, size = 0x4, scoped, tag = 'scoped memory for tpu_custom_call.1']
    #allocation4 [shape = 's32[1]{0}', space=sflag, size = 0x4, scoped, tag = 'scoped memory for tpu_custom_call.1']
    #allocation5 [shape = 'u8[8192]{0}', space=vmem, size = 0x2000, scoped, tag = 'input window, operand 1, single buffered']
    #allocation6 [shape = 's32[1]{0}', space=sflag, size = 0x4, scoped, tag = 'scoped memory for tpu_custom_call.1']
    #allocation7 [shape = 'u8[1024]{0}', space=vmem, size = 0x400, scoped, tag = 'output window, operand 0, single buffered']
    %7 = vsyncpa [#allocation3], 0
    %8 = vsyncpa [#allocation6], 0
    %9 = vsyncpa [#allocation4], 0
    // Predicated region
    $region2: #{tpu_custom_call.1} parent=1 // pred_check
      _
    $region3: #{tpu_custom_call.1} parent=1 // pred_check_branch
      %11 = sbr.rel (0) target = $region5
    $region4: #{tpu_custom_call.1} parent=1 // pred_region
      %s13 = ssub.s32 32, 32
      %14 = vsyncadd [#allocation3], %s13
      %s16 = sshll.u32 [#allocation2], 4
      %s17 = int_to_ptr.vmem [resolvable:$true] %s16
      %19 = dma.hbm_to_vmem [thread:$0]  %s0, 32, %s17, [#allocation3]
    $region5: #{tpu_custom_call.1} parent=1 // pred_fallthru
      _
    // Predicated region
    $region6: #{tpu_custom_call.1} parent=1 // pred_check
      _
    $region7: #{tpu_custom_call.1} parent=1 // pred_check_branch
      %21 = sbr.rel (0) target = $region9
    $region8: #{tpu_custom_call.1} parent=1 // pred_region
      %s23 = ssub.s32 256, 256
      %24 = vsyncadd [#allocation6], %s23
      %s25 = sshll.u32 [#allocation5], 4
      %s26 = int_to_ptr.vmem [resolvable:$true] %s25
      %31 = dma.hbm_to_vmem [thread:$0]  %s1, 256, %s26, [#allocation6], 128, 128, 8
    $region9: #{tpu_custom_call.1} parent=1 // pred_fallthru
      _
    // Predicated region
    $region10: #{tpu_custom_call.1} parent=1 // pred_check
      _
    $region11: #{tpu_custom_call.1} parent=1 // pred_check_branch
      %33 = sbr.rel (0) target = $region13
    $region12: #{tpu_custom_call.1} parent=1 // pred_region
      %34 = dma.done [#allocation3], 32
    $region13: #{tpu_custom_call.1} parent=1 // pred_fallthru
      _
    // Predicated region
    $region14: #{tpu_custom_call.1} parent=1 // pred_check
      _
    $region15: #{tpu_custom_call.1} parent=1 // pred_check_branch
      %36 = sbr.rel (0) target = $region17
    $region16: #{tpu_custom_call.1} parent=1 // pred_region
      %37 = dma.done [#allocation6], 256
    $region17: #{tpu_custom_call.1} parent=1 // pred_fallthru
      _
    %v38 = vld [vmem:[#allocation2] sm:$0x3]
    %v39 = vld [vmem:[#allocation5] sm:$0xff]
    %v40 = vld [vmem:[#allocation5 + $0x8] sm:$0x3]
    %v41 = vmul.f32 %v38, %v38
    %vm42 = vcmask 254976
    %v43 = vsel %vm42, %v41, 0.0
    %44 = vadd.xlane.f32.xlu0 %v43
    %v45 = vpop.xlane.xlu0 %44
    %v46 = vmax.f32 %v45, 1e-24
    %v47 = vrsqrt.pop %v46
    %v48 = vmul.f32 %v38, %v47
    %v49 = vmul.f32 %v39, %v39
    %v50 = vmul.f32 %v40, %v40
    %vm51 = vcmask 261120
    %v52 = vsel %vm51, %v49, 0.0
    %53 = vadd.xlane.f32.xlu0 %v52
    %v54 = vpop.xlane.xlu0 %53
    %v55 = vsel %vm42, %v50, 0.0
    %56 = vadd.xlane.f32.xlu0 %v55
    %v57 = vpop.xlane.xlu0 %56
    %v58 = vmax.f32 %v54, 1e-24
    %v59 = vmax.f32 %v57, 1e-24
    %v60 = vrsqrt.pop %v58
    %v61 = vrsqrt.pop %v59
    %v62 = vmul.f32 %v39, %v60
    %v63 = vmul.f32 %v40, %v61
    %v65 = vsel %vm51, %v48, 0
    %v68 = vsel %vm51, %v62, 0
    %v71 = vsel %vm51, %v63, 0
    %73 = vmatprep.subr.mxu0 0.0
    %74 = vmatpush1.xpose.msra.mxu0 0.0
    %75 = vmatprep.subr.mxu0 0.0
    %76 = vmatpush1.xpose.msra.mxu0 0.0
    %77 = vmatprep.subr.mxu0 0.0
    %78 = vmatpush1.xpose.msra.mxu0 0.0
    %79 = vmatprep.subr.mxu0 0.0
    %80 = vmatpush1.xpose.msra.mxu0 0.0
    %81 = vmatprep.subr.mxu0 0.0
    %82 = vmatpush1.xpose.msra.mxu0 0.0
    %83 = vmatprep.subr.mxu0 0.0
    %84 = vmatpush1.xpose.msra.mxu0 0.0
    %85 = vmatprep.subr.mxu0 0.0
    %86 = vmatpush1.xpose.msra.mxu0 0.0
    %87 = vmatprep.subr.mxu0 0.0
    %88 = vmatpush1.xpose.msra.mxu0 0.0
    %89 = vmatprep.subr.mxu0 0.0
    %90 = vmatpush1.xpose.msra.mxu0 0.0
    %91 = vmatprep.subr.mxu0 0.0
    %92 = vmatpush1.xpose.msra.mxu0 0.0
    %93 = vmatprep.subr.mxu0 0.0
    %94 = vmatpush1.xpose.msra.mxu0 0.0
    %95 = vmatprep.subr.mxu0 0.0
    %96 = vmatpush1.xpose.msra.mxu0 0.0
    %97 = vmatprep.subr.mxu0 0.0
    %98 = vmatpush1.xpose.msra.mxu0 0.0
    %99 = vmatprep.subr.mxu0 0.0
    %100 = vmatpush1.xpose.msra.mxu0 0.0
    %101 = vmatprep.subr.mxu0 0.0
    %102 = vmatpush1.xpose.msra.mxu0 %v71
    %103 = vmatprep.subr.mxu0 0.0
    %104 = vmatpush1.xpose.msra.mxu0 %v68
    %105 = vmatprep.subr.mxu0 0.0
    %106 = vmatpush2.xpose.msra.mxu0 0.0
    %107 = vmatprep.subr.mxu0 0.0
    %108 = vmatpush2.xpose.msra.mxu0 0.0
    %109 = vmatprep.subr.mxu0 0.0
    %110 = vmatpush2.xpose.msra.mxu0 0.0
    %111 = vmatprep.subr.mxu0 0.0
    %112 = vmatpush2.xpose.msra.mxu0 0.0
    %113 = vmatprep.subr.mxu0 0.0
    %114 = vmatpush2.xpose.msra.mxu0 0.0
    %115 = vmatprep.subr.mxu0 0.0
    %116 = vmatpush2.xpose.msra.mxu0 0.0
    %117 = vmatprep.subr.mxu0 0.0
    %118 = vmatpush2.xpose.msra.mxu0 0.0
    %119 = vmatprep.subr.mxu0 0.0
    %120 = vmatpush2.xpose.msra.mxu0 0.0
    %121 = vmatprep.subr.mxu0 0.0
    %122 = vmatpush2.xpose.msra.mxu0 0.0
    %123 = vmatprep.subr.mxu0 0.0
    %124 = vmatpush2.xpose.msra.mxu0 0.0
    %125 = vmatprep.subr.mxu0 0.0
    %126 = vmatpush2.xpose.msra.mxu0 0.0
    %127 = vmatprep.subr.mxu0 0.0
    %128 = vmatpush2.xpose.msra.mxu0 0.0
    %129 = vmatprep.subr.mxu0 0.0
    %130 = vmatpush2.xpose.msra.mxu0 0.0
    %131 = vmatprep.subr.mxu0 0.0
    %132 = vmatpush2.xpose.msra.mxu0 0.0
    %133 = vmatprep.subr.mxu0 0.0
    %134 = vmatpush2.xpose.msra.mxu0 0.0
    %135 = vmatprep.subr.mxu0 0.0
    %136 = vmatpush2.xpose.msra.mxu0 0.0
    %137 = vmatprep.mubr.f32.mxu0 0.0
    %138 = vmatmul.mubr.f32.gmra.mxu0 %v65
    %v139 = vpop.f32.mrf.mxu0
    %v140 = vadd.f32 0.0, %v139
    %v141 = vpop.f32.mrf.mxu0
    %142 = vdwg.mxu0
    %vm143 = vcmask 74752
    %144 = vst.msk [vmem:[#allocation7] sm:$0x3] %vm143, %v140
    // Predicated region
    $region18: #{tpu_custom_call.1} parent=1 // pred_check
      _
    $region19: #{tpu_custom_call.1} parent=1 // pred_check_branch
      %146 = sbr.rel (0) target = $region21
    $region20: #{tpu_custom_call.1} parent=1 // pred_region
      %s148 = ssub.s32 32, 32
      %149 = vsyncadd [#allocation4], %s148
      %s151 = sshll.u32 [#allocation7], 4
      %s152 = int_to_ptr.vmem [resolvable:$true] %s151
      %154 = dma.vmem_to_hbm [thread:$0]  %s152, 32, %s2, [#allocation4]
    $region21: #{tpu_custom_call.1} parent=1 // pred_fallthru
      _
    // Predicated region
    $region22: #{tpu_custom_call.1} parent=1 // pred_check
      _
    $region23: #{tpu_custom_call.1} parent=1 // pred_check_branch
      %156 = sbr.rel (0) target = $region25
    $region24: #{tpu_custom_call.1} parent=1 // pred_region
      %157 = dma.done [#allocation4], 32
    $region25: #{tpu_custom_call.1} parent=1 // pred_fallthru
      _
    %158 = vsyncpa [#allocation3], 1
    %159 = vsyncpa [#allocation6], 1
    %160 = vsyncpa [#allocation4], 1

</llo_original>
